<compile_context>
chip_gen: v7x
topology: tpu7x:2x2x1
jax: 0.10.0
libtpu: 0.0.40
codegen_flags: <defaults>
</compile_context>

<pallas_src>
import math

import jax
import jax.numpy as jnp
from jax import lax
from jax.experimental import pallas as pl
from jax.experimental.pallas import tpu as pltpu


def _cdiv(a, b):
    return (a + b - 1) // b


def _make_partial_stats_kernel(acc_w, num_sub, unroll):
    """Build the kernel that accumulates per-row moments over one chunk."""

    def kernel(x_ref, y_ref, out_ref, sx_ref, sy_ref, sxx_ref, syy_ref, sxy_ref):
        k = pl.program_id(1)
        acc_refs = (sx_ref, sy_ref, sxx_ref, syy_ref, sxy_ref)

        @pl.when(k == 0)
        def _init():
            for r in acc_refs:
                r[...] = jnp.zeros_like(r)

        def body(i, carry):
            sx, sy, sxx, syy, sxy = carry
            start = pl.multiple_of(i * acc_w, acc_w)
            xc = x_ref[:, pl.ds(start, acc_w)].astype(jnp.float32)
            yc = y_ref[:, pl.ds(start, acc_w)].astype(jnp.float32)
            return (sx + xc, sy + yc, sxx + xc * xc, syy + yc * yc, sxy + xc * yc)

        # Accumulators live in vregs across the sub-chunk loop; VMEM scratch is
        # only read/written once per grid step.
        carry = tuple(r[...] for r in acc_refs)
        carry = lax.fori_loop(0, num_sub, body, carry, unroll=unroll)
        for r, v in zip(acc_refs, carry):
            r[...] = v

        @pl.when(k == pl.num_programs(1) - 1)
        def _finalize():
            # One cross-lane (XLU) reduction per statistic, once per chunk.
            out_ref[...] = jnp.concatenate(
                [jnp.sum(v, axis=1, keepdims=True) for v in carry], axis=1)

    return kernel


def _vmem_plan(user_budget_bytes):
    """Generation-aware scoped-VMEM limit and streaming-buffer budget."""
    try:
        cap = int(pltpu.get_tpu_info().vmem_capacity_bytes)
    except Exception:
        cap = 64 * 1024 * 1024   # conservative fallback (v7x per-TC size)
    limit = max(32 * 1024 * 1024, min((cap * 3) // 4, 100 * 1024 * 1024))
    if user_budget_bytes is None:
        budget = (limit * 2) // 3
    else:
        budget = min(int(user_budget_bytes), (limit * 7) // 8)
    return limit, budget


def _default_parallel_chunks():
    """One chunk per TensorCore when queryable; 1 otherwise (never wrong)."""
    try:
        info = pltpu.get_tpu_info()
        for name in ("num_tensorcores", "tensorcore_count", "cores_per_chip",
                     "num_cores"):
            n = getattr(info, name, None)
            if isinstance(n, int) and n > 0:
                return min(n, 2)
    except Exception:
        pass
    return 1


def normalized_cross_correlation_loss(inp, target, *,
                                      acc_w=512,
                                      max_subchunks=256,
                                      inner_unroll=8,
                                      num_parallel_chunks=None,
                                      vmem_budget_bytes=None):
    """1 - NCC of `inp` vs `target` (same shape, leading dim = batch)."""
    assert inp.shape == target.shape, (inp.shape, target.shape)
    assert acc_w % 128 == 0, acc_w
    B = inp.shape[0]
    S = math.prod(inp.shape[1:])

    x = inp.reshape(B, S)
    y = target.reshape(B, S)

    itemsize = jnp.dtype(x.dtype).itemsize
    sublane_min = {4: 8, 2: 16, 1: 32}.get(itemsize, 8)

    # Fold small batches into sublanes (row-major reshape; folded rows are
    # re-summed in the wrapper) so every vreg sublane carries real data.
    fold = max(1, sublane_min // B) if B < sublane_min else 1
    R = B * fold
    R_pad = _cdiv(R, sublane_min) * sublane_min
    S2 = _cdiv(S, fold)                    # per-folded-row length (pre-pad)

    vmem_limit, stream_budget = _vmem_plan(vmem_budget_bytes)

    p = (num_parallel_chunks if num_parallel_chunks is not None
         else _default_parallel_chunks())
    p = max(1, min(int(p), 2))

    # Spatial tile: as large as the streaming budget allows (2 inputs x 2
    # pipeline buffers), capped by the inner-loop size and by what is actually
    # needed to cover one parallel chunk.
    per_lane_bytes = R_pad * 2 * 2 * itemsize
    t = max(acc_w, (stream_budget // per_lane_bytes) // acc_w * acc_w)
    t = min(t, acc_w * max_subchunks)
    t = min(t, _cdiv(_cdiv(S2, p), acc_w) * acc_w)
    steps = _cdiv(S2, p * t)
    num_sub = t // acc_w
    unroll = max(1, min(inner_unroll, num_sub))

    # Zero-pad the spatial tail: zeros add nothing to any moment and we
    # normalize by the true S below, so padding is exact.
    s2_pad = p * steps * t
    s_target = fold * s2_pad
    if s_target != S:
        x = jnp.pad(x, ((0, 0), (0, s_target - S)))
        y = jnp.pad(y, ((0, 0), (0, s_target - S)))
    x = x.reshape(R, s2_pad)
    y = y.reshape(R, s2_pad)

    kernel = _make_partial_stats_kernel(acc_w, num_sub, unroll)

    partial_stats = pl.pallas_call(
        kernel,
        out_shape=jax.ShapeDtypeStruct((p, R, 5), jnp.float32),
        grid_spec=pltpu.PrefetchScalarGridSpec(
            num_scalar_prefetch=0,
            grid=(p, steps),
            in_specs=[
                pl.BlockSpec((R, t), lambda pi, k: (0, pi * steps + k)),
                pl.BlockSpec((R, t), lambda pi, k: (0, pi * steps + k)),
            ],
            out_specs=pl.BlockSpec((None, R, 5), lambda pi, k: (pi, 0, 0)),
            scratch_shapes=[pltpu.VMEM((R, acc_w), jnp.float32)
                            for _ in range(5)],
        ),
        compiler_params=pltpu.CompilerParams(
            dimension_semantics=("parallel", "arbitrary"),
            vmem_limit_bytes=int(vmem_limit)),
    )(x, y)

    # Combine per-chunk and per-folded-row partial moments; apply the NCC
    # formula (tiny, O(B)) with the true element count S.
    stats = jnp.sum(partial_stats, axis=0)               # (R, 5)
    stats = jnp.sum(stats.reshape(B, fold, 5), axis=1)   # (B, 5)
    s_inv = jnp.float32(1.0 / S)
    sum_x, sum_y, sum_xx, sum_yy, sum_xy = (stats[:, i] for i in range(5))
    mx = sum_x * s_inv
    my = sum_y * s_inv
    cov = sum_xy * s_inv - mx * my                        # mean(xm*ym)
    vx = jnp.maximum(sum_xx * s_inv - mx * mx, 0.0)       # mean(xm^2), clamp fp noise
    vy = jnp.maximum(sum_yy * s_inv - my * my, 0.0)       # mean(ym^2)
    ncc = cov / (jnp.sqrt(vx) * jnp.sqrt(vy))
    return 1.0 - jnp.mean(ncc)


def _reference_ncc_loss(inp, target):
    B = inp.shape[0]
    xr = inp.reshape(B, -1).astype(jnp.float32)
    yr = target.reshape(B, -1).astype(jnp.float32)
    xm = xr - jnp.mean(xr, axis=1, keepdims=True)
    ym = yr - jnp.mean(yr, axis=1, keepdims=True)
    ncc = jnp.mean(xm * ym, axis=1) / (
        jnp.sqrt(jnp.mean(xm ** 2, axis=1)) * jnp.sqrt(jnp.mean(ym ** 2, axis=1)))
    return 1.0 - jnp.mean(ncc)


if __name__ == "__main__":
    key = jax.random.PRNGKey(0)
    k1, k2, k3, k4 = jax.random.split(key, 4)

    # Test 1: (2, 4, 16, 16) f32 -> S = 1024; exercises the sublane-fold path
    # (B=2 -> 8 folded rows) with a single grid step.
    B, C, H, W = 2, 4, 16, 16
    x1 = jax.random.normal(k1, (B, C, H, W), dtype=jnp.float32)
    y1 = 0.7 * x1 + 0.3 * jax.random.normal(k2, (B, C, H, W), dtype=jnp.float32)
    loss1 = jax.block_until_ready(normalized_cross_correlation_loss(x1, y1))
    ref1 = _reference_ncc_loss(x1, y1)
    assert abs(float(loss1) - float(ref1)) < 1e-4, (float(loss1), float(ref1))

    # Test 2: ragged spatial size (S = 231, not a multiple of anything nice)
    # -> zero-padding path.
    x2 = jax.random.normal(k3, (2, 3, 7, 11), dtype=jnp.float32)
    y2 = 0.5 * x2 + 0.5 * jax.random.normal(k4, (2, 3, 7, 11), dtype=jnp.float32)
    loss2 = jax.block_until_ready(normalized_cross_correlation_loss(x2, y2))
    ref2 = _reference_ncc_loss(x2, y2)
    assert abs(float(loss2) - float(ref2)) < 1e-4, (float(loss2), float(ref2))

    # Test 3: force a multi-step reduction grid (init / accumulate / finalize).
    loss3 = jax.block_until_ready(normalized_cross_correlation_loss(
        x1, y1, acc_w=128, max_subchunks=1, num_parallel_chunks=1))
    assert abs(float(loss3) - float(ref1)) < 1e-4, (float(loss3), float(ref1))

    # Test 4: force two parallel chunks (partial-stats combine path).
    loss4 = jax.block_until_ready(normalized_cross_correlation_loss(
        x1, y1, acc_w=128, max_subchunks=1, num_parallel_chunks=2))
    assert abs(float(loss4) - float(ref1)) < 1e-4, (float(loss4), float(ref1))

    # Test 5: bf16 inputs (16-sublane fold, per-sub-chunk upcast to f32).
    x5 = x1.astype(jnp.bfloat16)
    y5 = y1.astype(jnp.bfloat16)
    loss5 = jax.block_until_ready(normalized_cross_correlation_loss(x5, y5))
    ref5 = _reference_ncc_loss(x5, y5)
    assert abs(float(loss5) - float(ref5)) < 5e-3, (float(loss5), float(ref5))

    print("KERNEL_OK")
</pallas_src>

<mosaic_0001>
module attributes {stable_mosaic.version = 11 : i64} {
  func.func @kernel(%arg0: i32, %arg1: i32, %arg2: memref<8x512xf32, #tpu.memory_space<vmem>>, %arg3: memref<8x512xf32, #tpu.memory_space<vmem>>, %arg4: memref<1x8x5xf32, #tpu.memory_space<vmem>>, %arg5: memref<8x512xf32, #tpu.memory_space<vmem>>, %arg6: memref<8x512xf32, #tpu.memory_space<vmem>>, %arg7: memref<8x512xf32, #tpu.memory_space<vmem>>, %arg8: memref<8x512xf32, #tpu.memory_space<vmem>>, %arg9: memref<8x512xf32, #tpu.memory_space<vmem>>) attributes {dimension_semantics = [#tpu.dimension_semantics<parallel>, #tpu.dimension_semantics<arbitrary>], iteration_bounds = array<i64: 1, 1>, scalar_prefetch = 0 : i64, scratch_operands = 5 : i64, tpu.core_type = #tpu.core_type<tc>, window_params = [{transform_indices = @transform_0, window_bounds = array<i64: 8, 512>}, {transform_indices = @transform_1, window_bounds = array<i64: 8, 512>}, {transform_indices = @transform_2, window_bounds = array<i64: 1, 8, 5>}]} {
    %c0_i32 = arith.constant 0 : i32
    %0 = arith.cmpi eq, %arg1, %c0_i32 : i32
    %1 = arith.extui %0 : i1 to i32
    %c0_i32_0 = arith.constant 0 : i32
    %2 = arith.cmpi ne, %1, %c0_i32_0 : i32
    scf.if %2 {
      %cst = arith.constant 0.000000e+00 : f32
      %30 = vector.broadcast %cst : f32 to vector<8x512xf32>
      %c0_25 = arith.constant 0 : index
      %c0_26 = arith.constant 0 : index
      %31 = vector.load %arg5[%c0_25, %c0_26] : memref<8x512xf32, #tpu.memory_space<vmem>>, vector<8x512xf32>
      tpu.vector_store %arg5[%c0_25, %c0_26], %30 {strides = array<i32>} : memref<8x512xf32, #tpu.memory_space<vmem>>, vector<8x512xf32>,
      %cst_27 = arith.constant 0.000000e+00 : f32
      %32 = vector.broadcast %cst_27 : f32 to vector<8x512xf32>
      %c0_28 = arith.constant 0 : index
      %c0_29 = arith.constant 0 : index
      %33 = vector.load %arg6[%c0_28, %c0_29] : memref<8x512xf32, #tpu.memory_space<vmem>>, vector<8x512xf32>
      tpu.vector_store %arg6[%c0_28, %c0_29], %32 {strides = array<i32>} : memref<8x512xf32, #tpu.memory_space<vmem>>, vector<8x512xf32>,
      %cst_30 = arith.constant 0.000000e+00 : f32
      %34 = vector.broadcast %cst_30 : f32 to vector<8x512xf32>
      %c0_31 = arith.constant 0 : index
      %c0_32 = arith.constant 0 : index
      %35 = vector.load %arg7[%c0_31, %c0_32] : memref<8x512xf32, #tpu.memory_space<vmem>>, vector<8x512xf32>
      tpu.vector_store %arg7[%c0_31, %c0_32], %34 {strides = array<i32>} : memref<8x512xf32, #tpu.memory_space<vmem>>, vector<8x512xf32>,
      %cst_33 = arith.constant 0.000000e+00 : f32
      %36 = vector.broadcast %cst_33 : f32 to vector<8x512xf32>
      %c0_34 = arith.constant 0 : index
      %c0_35 = arith.constant 0 : index
      %37 = vector.load %arg8[%c0_34, %c0_35] : memref<8x512xf32, #tpu.memory_space<vmem>>, vector<8x512xf32>
      tpu.vector_store %arg8[%c0_34, %c0_35], %36 {strides = array<i32>} : memref<8x512xf32, #tpu.memory_space<vmem>>, vector<8x512xf32>,
      %cst_36 = arith.constant 0.000000e+00 : f32
      %38 = vector.broadcast %cst_36 : f32 to vector<8x512xf32>
      %c0_37 = arith.constant 0 : index
      %c0_38 = arith.constant 0 : index
      %39 = vector.load %arg9[%c0_37, %c0_38] : memref<8x512xf32, #tpu.memory_space<vmem>>, vector<8x512xf32>
      tpu.vector_store %arg9[%c0_37, %c0_38], %38 {strides = array<i32>} : memref<8x512xf32, #tpu.memory_space<vmem>>, vector<8x512xf32>,
    } else {
    }
    %c0 = arith.constant 0 : index
    %c0_1 = arith.constant 0 : index
    %3 = vector.load %arg5[%c0, %c0_1] : memref<8x512xf32, #tpu.memory_space<vmem>>, vector<8x512xf32>
    %c0_2 = arith.constant 0 : index
    %c0_3 = arith.constant 0 : index
    %4 = vector.load %arg6[%c0_2, %c0_3] : memref<8x512xf32, #tpu.memory_space<vmem>>, vector<8x512xf32>
    %c0_4 = arith.constant 0 : index
    %c0_5 = arith.constant 0 : index
    %5 = vector.load %arg7[%c0_4, %c0_5] : memref<8x512xf32, #tpu.memory_space<vmem>>, vector<8x512xf32>
    %c0_6 = arith.constant 0 : index
    %c0_7 = arith.constant 0 : index
    %6 = vector.load %arg8[%c0_6, %c0_7] : memref<8x512xf32, #tpu.memory_space<vmem>>, vector<8x512xf32>
    %c0_8 = arith.constant 0 : index
    %c0_9 = arith.constant 0 : index
    %7 = vector.load %arg9[%c0_8, %c0_9] : memref<8x512xf32, #tpu.memory_space<vmem>>, vector<8x512xf32>
    %c0_i32_10 = arith.constant 0 : i32
    %c512_i32 = arith.constant 512 : i32
    %8 = arith.muli %c0_i32_10, %c512_i32 : i32
    %9 = tpu.assume_multiple %8, 512 : i32
    %c0_11 = arith.constant 0 : index
    %10 = arith.index_cast %9 : i32 to index
    %11 = vector.load %arg2[%c0_11, %10] : memref<8x512xf32, #tpu.memory_space<vmem>>, vector<8x512xf32>
    %c0_12 = arith.constant 0 : index
    %12 = arith.index_cast %9 : i32 to index
    %13 = vector.load %arg3[%c0_12, %12] : memref<8x512xf32, #tpu.memory_space<vmem>>, vector<8x512xf32>
    %14 = arith.addf %3, %11 : vector<8x512xf32>
    %15 = arith.addf %4, %13 : vector<8x512xf32>
    %16 = arith.mulf %11, %11 : vector<8x512xf32>
    %17 = arith.addf %5, %16 : vector<8x512xf32>
    %18 = arith.mulf %13, %13 : vector<8x512xf32>
    %19 = arith.addf %6, %18 : vector<8x512xf32>
    %20 = arith.mulf %11, %13 : vector<8x512xf32>
    %21 = arith.addf %7, %20 : vector<8x512xf32>
    %c1_i32 = arith.constant 1 : i32
    %c0_13 = arith.constant 0 : index
    %c0_14 = arith.constant 0 : index
    %22 = vector.load %arg5[%c0_13, %c0_14] : memref<8x512xf32, #tpu.memory_space<vmem>>, vector<8x512xf32>
    tpu.vector_store %arg5[%c0_13, %c0_14], %14 {strides = array<i32>} : memref<8x512xf32, #tpu.memory_space<vmem>>, vector<8x512xf32>,
    %c0_15 = arith.constant 0 : index
    %c0_16 = arith.constant 0 : index
    %23 = vector.load %arg6[%c0_15, %c0_16] : memref<8x512xf32, #tpu.memory_space<vmem>>, vector<8x512xf32>
    tpu.vector_store %arg6[%c0_15, %c0_16], %15 {strides = array<i32>} : memref<8x512xf32, #tpu.memory_space<vmem>>, vector<8x512xf32>,
    %c0_17 = arith.constant 0 : index
    %c0_18 = arith.constant 0 : index
    %24 = vector.load %arg7[%c0_17, %c0_18] : memref<8x512xf32, #tpu.memory_space<vmem>>, vector<8x512xf32>
    tpu.vector_store %arg7[%c0_17, %c0_18], %17 {strides = array<i32>} : memref<8x512xf32, #tpu.memory_space<vmem>>, vector<8x512xf32>,
    %c0_19 = arith.constant 0 : index
    %c0_20 = arith.constant 0 : index
    %25 = vector.load %arg8[%c0_19, %c0_20] : memref<8x512xf32, #tpu.memory_space<vmem>>, vector<8x512xf32>
    tpu.vector_store %arg8[%c0_19, %c0_20], %19 {strides = array<i32>} : memref<8x512xf32, #tpu.memory_space<vmem>>, vector<8x512xf32>,
    %c0_21 = arith.constant 0 : index
    %c0_22 = arith.constant 0 : index
    %26 = vector.load %arg9[%c0_21, %c0_22] : memref<8x512xf32, #tpu.memory_space<vmem>>, vector<8x512xf32>
    tpu.vector_store %arg9[%c0_21, %c0_22], %21 {strides = array<i32>} : memref<8x512xf32, #tpu.memory_space<vmem>>, vector<8x512xf32>,
    %c0_i32_23 = arith.constant 0 : i32
    %27 = arith.cmpi eq, %arg1, %c0_i32_23 : i32
    %28 = arith.extui %27 : i1 to i32
    %c0_i32_24 = arith.constant 0 : i32
    %29 = arith.cmpi ne, %28, %c0_i32_24 : i32
    scf.if %29 {
      %cst = arith.constant dense<0.000000e+00> : vector<8xf32>
      %30 = vector.multi_reduction <add>, %14, %cst [1] : vector<8x512xf32> to vector<8xf32>
      %31 = vector.shape_cast %30 : vector<8xf32> to vector<8x1xf32>
      %cst_25 = arith.constant dense<0.000000e+00> : vector<8xf32>
      %32 = vector.multi_reduction <add>, %15, %cst_25 [1] : vector<8x512xf32> to vector<8xf32>
      %33 = vector.shape_cast %32 : vector<8xf32> to vector<8x1xf32>
      %cst_26 = arith.constant dense<0.000000e+00> : vector<8xf32>
      %34 = vector.multi_reduction <add>, %17, %cst_26 [1] : vector<8x512xf32> to vector<8xf32>
      %35 = vector.shape_cast %34 : vector<8xf32> to vector<8x1xf32>
      %cst_27 = arith.constant dense<0.000000e+00> : vector<8xf32>
      %36 = vector.multi_reduction <add>, %19, %cst_27 [1] : vector<8x512xf32> to vector<8xf32>
      %37 = vector.shape_cast %36 : vector<8xf32> to vector<8x1xf32>
      %cst_28 = arith.constant dense<0.000000e+00> : vector<8xf32>
      %38 = vector.multi_reduction <add>, %21, %cst_28 [1] : vector<8x512xf32> to vector<8xf32>
      %39 = vector.shape_cast %38 : vector<8xf32> to vector<8x1xf32>
      %40 = tpu.concatenate %31, %33, %35, %37, %39 in 1 : vector<8x1xf32>, vector<8x1xf32>, vector<8x1xf32>, vector<8x1xf32>, vector<8x1xf32> -> vector<8x5xf32>
      %c0_29 = arith.constant 0 : index
      %c0_30 = arith.constant 0 : index
      %c0_31 = arith.constant 0 : index
      %41 = vector.load %arg4[%c0_29, %c0_30, %c0_31] : memref<1x8x5xf32, #tpu.memory_space<vmem>>, vector<1x8x5xf32>
      %42 = vector.shape_cast %41 : vector<1x8x5xf32> to vector<8x5xf32>
      %43 = vector.shape_cast %40 : vector<8x5xf32> to vector<1x8x5xf32>
      tpu.vector_store %arg4[%c0_29, %c0_30, %c0_31], %43 {strides = array<i32>} : memref<1x8x5xf32, #tpu.memory_space<vmem>>, vector<1x8x5xf32>,
    } else {
    }
    return
  }
  func.func @transform_0(%arg0: i32, %arg1: i32) -> (i32, i32) {
    %c1_i32 = arith.constant 1 : i32
    %0 = arith.muli %arg0, %c1_i32 : i32
    %1 = arith.addi %0, %arg1 : i32
    %c0_i32 = arith.constant 0 : i32
    %c0_i32_0 = arith.constant 0 : i32
    return %c0_i32, %1 : i32, i32
  }
  func.func @transform_1(%arg0: i32, %arg1: i32) -> (i32, i32) {
    %c1_i32 = arith.constant 1 : i32
    %0 = arith.muli %arg0, %c1_i32 : i32
    %1 = arith.addi %0, %arg1 : i32
    %c0_i32 = arith.constant 0 : i32
    %c0_i32_0 = arith.constant 0 : i32
    return %c0_i32, %1 : i32, i32
  }
  func.func @transform_2(%arg0: i32, %arg1: i32) -> (i32, i32, i32) {
    %c0_i32 = arith.constant 0 : i32
    %c0_i32_0 = arith.constant 0 : i32
    %c0_i32_1 = arith.constant 0 : i32
    return %arg0, %c0_i32, %c0_i32_0 : i32, i32, i32
  }
}

</mosaic_0001>

<llo_original>
// kernel: tpu_custom_call.1
$region0: #{tpu_custom_call.1}
  #allocation0 [shape = 'u32[]', space=smem, size = 0x4, offset = 0x4, fixed_abs, tag = 'smem constant byte address 0x4 - core index']
  #allocation1 [shape = 'u32[144,128]{1,0:T(1,128)}', space=vmem, size = 0x12000, scoped, tag = 'internal scratch']
  #allocation2 [shape = 'f32[8,512]{1,0:T(8,128)}', space=vmem, size = 0x4000, scoped, tag = 'scratch operand']
  #allocation3 [shape = 'f32[8,512]{1,0:T(8,128)}', space=vmem, size = 0x4000, scoped, tag = 'scratch operand']
  #allocation4 [shape = 'f32[8,512]{1,0:T(8,128)}', space=vmem, size = 0x4000, scoped, tag = 'scratch operand']
  #allocation5 [shape = 'f32[8,512]{1,0:T(8,128)}', space=vmem, size = 0x4000, scoped, tag = 'scratch operand']
  #allocation6 [shape = 'f32[8,512]{1,0:T(8,128)}', space=vmem, size = 0x4000, scoped, tag = 'scratch operand']
  %s0 = inlined_call_operand.hbm [shape: f32[8,512], index: 0, kind: input, shape index: {}]
  %s1 = inlined_call_operand.hbm [shape: f32[8,512], index: 1, kind: input, shape index: {}]
  %s2 = inlined_call_operand.vmem [shape: f32[1,8,5], index: 2, kind: output, shape index: {}]
  %s3 = sld [smem:[#allocation0]]
  $region34: #{tpu_custom_call.1} parent=0
    _
  %s5 = ssub.s32 1, %s3
  %s6 = scalar_select 0, %s5, %s3
  $region1: #{tpu_custom_call.1} parent=0
    #allocation7 [shape = 'u8[16384]{0}', space=vmem, size = 0x4000, scoped, tag = 'input window, operand 0, single buffered']
    #allocation8 [shape = 's32[1]{0}', space=sflag, size = 0x4, scoped, tag = 'scoped memory for tpu_custom_call.1']
    #allocation9 [shape = 'u8[16384]{0}', space=vmem, size = 0x4000, scoped, tag = 'input window, operand 1, single buffered']
    #allocation10 [shape = 's32[1]{0}', space=sflag, size = 0x4, scoped, tag = 'scoped memory for tpu_custom_call.1']
    %7 = vsyncpa [#allocation8], 0
    %8 = vsyncpa [#allocation10], 0
    // Predicated region
    $region2: #{tpu_custom_call.1} parent=1 // pred_check
      _
    $region3: #{tpu_custom_call.1} parent=1 // pred_check_branch
      %10 = sbr.rel (0) target = $region5
    $region4: #{tpu_custom_call.1} parent=1 // pred_region
      %s11 = sadd.s32 0, 0
      %s12 = smul.u32 4, %s11
      %s14 = ssub.s32 512, 512
      %15 = vsyncadd [#allocation8], %s14
      %s16 = smul.addr %s12, 128
      %s17 = scalar_lea.hbm %s0, %s16
      %s19 = sshll.u32 [#allocation7], 4
      %s20 = int_to_ptr.vmem [resolvable:$true] %s19
      %22 = dma.hbm_to_vmem [thread:$0]  %s17, 512, %s20, [#allocation8]
    $region5: #{tpu_custom_call.1} parent=1 // pred_fallthru
      _
    // Predicated region
    $region6: #{tpu_custom_call.1} parent=1 // pred_check
      _
    $region7: #{tpu_custom_call.1} parent=1 // pred_check_branch
      %24 = sbr.rel (0) target = $region9
    $region8: #{tpu_custom_call.1} parent=1 // pred_region
      %s25 = sadd.s32 0, 0
      %s26 = smul.u32 4, %s25
      %s28 = ssub.s32 512, 512
      %29 = vsyncadd [#allocation10], %s28
      %s30 = smul.addr %s26, 128
      %s31 = scalar_lea.hbm %s1, %s30
      %s33 = sshll.u32 [#allocation9], 4
      %s34 = int_to_ptr.vmem [resolvable:$true] %s33
      %36 = dma.hbm_to_vmem [thread:$0]  %s31, 512, %s34, [#allocation10]
    $region9: #{tpu_custom_call.1} parent=1 // pred_fallthru
      _
    // Predicated region
    $region10: #{tpu_custom_call.1} parent=1 // pred_check
      _
    $region11: #{tpu_custom_call.1} parent=1 // pred_check_branch
      %38 = sbr.rel (0) target = $region13
    $region12: #{tpu_custom_call.1} parent=1 // pred_region
      %39 = dma.done [#allocation8], 512
    $region13: #{tpu_custom_call.1} parent=1 // pred_fallthru
      _
    // Predicated region
    $region14: #{tpu_custom_call.1} parent=1 // pred_check
      _
    $region15: #{tpu_custom_call.1} parent=1 // pred_check_branch
      %41 = sbr.rel (0) target = $region17
    $region16: #{tpu_custom_call.1} parent=1 // pred_region
      %42 = dma.done [#allocation10], 512
    $region17: #{tpu_custom_call.1} parent=1 // pred_fallthru
      _
    %s43 = sadd.s32 0, 0
    %s44 = smul.u32 4, %s43
    %s45 = sadd.s32 0, 0
    %s46 = smul.u32 4, %s45
    %p47 = scmp.eq.s32.totalorder 0, 0
    // Predicated region
    $region18: #{tpu_custom_call.1} parent=1 // pred_check
      %p48 = pneg %p47
    $region19: #{tpu_custom_call.1} parent=1 // pred_check_branch
      %50 = sbr.rel (%p48) target = $region21
    $region20: #{tpu_custom_call.1} parent=1 // pred_region
      %51 = vst [vmem:[#allocation2] sm:$0xff] 0.0
      %52 = vst [vmem:[#allocation2 + $0x8] sm:$0xff] 0.0
      %53 = vst [vmem:[#allocation2 + $0x10] sm:$0xff] 0.0
      %54 = vst [vmem:[#allocation2 + $0x18] sm:$0xff] 0.0
      %55 = vst [vmem:[#allocation3] sm:$0xff] 0.0
      %56 = vst [vmem:[#allocation3 + $0x8] sm:$0xff] 0.0
      %57 = vst [vmem:[#allocation3 + $0x10] sm:$0xff] 0.0
      %58 = vst [vmem:[#allocation3 + $0x18] sm:$0xff] 0.0
      %59 = vst [vmem:[#allocation4] sm:$0xff] 0.0
      %60 = vst [vmem:[#allocation4 + $0x8] sm:$0xff] 0.0
      %61 = vst [vmem:[#allocation4 + $0x10] sm:$0xff] 0.0
      %62 = vst [vmem:[#allocation4 + $0x18] sm:$0xff] 0.0
      %63 = vst [vmem:[#allocation5] sm:$0xff] 0.0
      %64 = vst [vmem:[#allocation5 + $0x8] sm:$0xff] 0.0
      %65 = vst [vmem:[#allocation5 + $0x10] sm:$0xff] 0.0
      %66 = vst [vmem:[#allocation5 + $0x18] sm:$0xff] 0.0
      %67 = vst [vmem:[#allocation6] sm:$0xff] 0.0
      %68 = vst [vmem:[#allocation6 + $0x8] sm:$0xff] 0.0
      %69 = vst [vmem:[#allocation6 + $0x10] sm:$0xff] 0.0
      %70 = vst [vmem:[#allocation6 + $0x18] sm:$0xff] 0.0
    $region21: #{tpu_custom_call.1} parent=1 // pred_fallthru
      _
    %v71 = vld [vmem:[#allocation2] sm:$0xff]
    %v72 = vld [vmem:[#allocation2 + $0x8] sm:$0xff]
    %v73 = vld [vmem:[#allocation2 + $0x10] sm:$0xff]
    %v74 = vld [vmem:[#allocation2 + $0x18] sm:$0xff]
    %v75 = vld [vmem:[#allocation3] sm:$0xff]
    %v76 = vld [vmem:[#allocation3 + $0x8] sm:$0xff]
    %v77 = vld [vmem:[#allocation3 + $0x10] sm:$0xff]
    %v78 = vld [vmem:[#allocation3 + $0x18] sm:$0xff]
    %v79 = vld [vmem:[#allocation4] sm:$0xff]
    %v80 = vld [vmem:[#allocation4 + $0x8] sm:$0xff]
    %v81 = vld [vmem:[#allocation4 + $0x10] sm:$0xff]
    %v82 = vld [vmem:[#allocation4 + $0x18] sm:$0xff]
    %v83 = vld [vmem:[#allocation5] sm:$0xff]
    %v84 = vld [vmem:[#allocation5 + $0x8] sm:$0xff]
    %v85 = vld [vmem:[#allocation5 + $0x10] sm:$0xff]
    %v86 = vld [vmem:[#allocation5 + $0x18] sm:$0xff]
    %v87 = vld [vmem:[#allocation6] sm:$0xff]
    %v88 = vld [vmem:[#allocation6 + $0x8] sm:$0xff]
    %v89 = vld [vmem:[#allocation6 + $0x10] sm:$0xff]
    %v90 = vld [vmem:[#allocation6 + $0x18] sm:$0xff]
    %v91 = vld [vmem:[#allocation7] sm:$0xff]
    %v92 = vld [vmem:[#allocation7 + $0x8] sm:$0xff]
    %v93 = vld [vmem:[#allocation7 + $0x10] sm:$0xff]
    %v94 = vld [vmem:[#allocation7 + $0x18] sm:$0xff]
    %v95 = vld [vmem:[#allocation9] sm:$0xff]
    %v96 = vld [vmem:[#allocation9 + $0x8] sm:$0xff]
    %v97 = vld [vmem:[#allocation9 + $0x10] sm:$0xff]
    %v98 = vld [vmem:[#allocation9 + $0x18] sm:$0xff]
    %v99 = vadd.f32 %v71, %v91
    %v100 = vadd.f32 %v72, %v92
    %v101 = vadd.f32 %v73, %v93
    %v102 = vadd.f32 %v74, %v94
    %v103 = vadd.f32 %v75, %v95
    %v104 = vadd.f32 %v76, %v96
    %v105 = vadd.f32 %v77, %v97
    %v106 = vadd.f32 %v78, %v98
    %v107 = vmul.f32 %v91, %v91
    %v108 = vmul.f32 %v92, %v92
    %v109 = vmul.f32 %v93, %v93
    %v110 = vmul.f32 %v94, %v94
    %v111 = vadd.f32 %v79, %v107
    %v112 = vadd.f32 %v80, %v108
    %v113 = vadd.f32 %v81, %v109
    %v114 = vadd.f32 %v82, %v110
    %v115 = vmul.f32 %v95, %v95
    %v116 = vmul.f32 %v96, %v96
    %v117 = vmul.f32 %v97, %v97
    %v118 = vmul.f32 %v98, %v98
    %v119 = vadd.f32 %v83, %v115
    %v120 = vadd.f32 %v84, %v116
    %v121 = vadd.f32 %v85, %v117
    %v122 = vadd.f32 %v86, %v118
    %v123 = vmul.f32 %v91, %v95
    %v124 = vmul.f32 %v92, %v96
    %v125 = vmul.f32 %v93, %v97
    %v126 = vmul.f32 %v94, %v98
    %v127 = vadd.f32 %v87, %v123
    %v128 = vadd.f32 %v88, %v124
    %v129 = vadd.f32 %v89, %v125
    %v130 = vadd.f32 %v90, %v126
    %131 = vst [vmem:[#allocation2] sm:$0xff] %v99
    %132 = vst [vmem:[#allocation2 + $0x8] sm:$0xff] %v100
    %133 = vst [vmem:[#allocation2 + $0x10] sm:$0xff] %v101
    %134 = vst [vmem:[#allocation2 + $0x18] sm:$0xff] %v102
    %135 = vst [vmem:[#allocation3] sm:$0xff] %v103
    %136 = vst [vmem:[#allocation3 + $0x8] sm:$0xff] %v104
    %137 = vst [vmem:[#allocation3 + $0x10] sm:$0xff] %v105
    %138 = vst [vmem:[#allocation3 + $0x18] sm:$0xff] %v106
    %139 = vst [vmem:[#allocation4] sm:$0xff] %v111
    %140 = vst [vmem:[#allocation4 + $0x8] sm:$0xff] %v112
    %141 = vst [vmem:[#allocation4 + $0x10] sm:$0xff] %v113
    %142 = vst [vmem:[#allocation4 + $0x18] sm:$0xff] %v114
    %143 = vst [vmem:[#allocation5] sm:$0xff] %v119
    %144 = vst [vmem:[#allocation5 + $0x8] sm:$0xff] %v120
    %145 = vst [vmem:[#allocation5 + $0x10] sm:$0xff] %v121
    %146 = vst [vmem:[#allocation5 + $0x18] sm:$0xff] %v122
    %147 = vst [vmem:[#allocation6] sm:$0xff] %v127
    %148 = vst [vmem:[#allocation6 + $0x8] sm:$0xff] %v128
    %149 = vst [vmem:[#allocation6 + $0x10] sm:$0xff] %v129
    %150 = vst [vmem:[#allocation6 + $0x18] sm:$0xff] %v130
    // Predicated region
    $region22: #{tpu_custom_call.1} parent=1 // pred_check
      %p151 = pneg %p47
    $region23: #{tpu_custom_call.1} parent=1 // pred_check_branch
      %153 = sbr.rel (%p151) target = $region25
    $region24: #{tpu_custom_call.1} parent=1 // pred_region
      %v154 = vadd.f32 %v99, %v100
      %v155 = vadd.f32 %v154, %v101
      %v156 = vadd.f32 %v155, %v102
      %157 = vadd.xlane.f32.xlu0 %v156
      %v158 = vpop.xlane.xlu0 %157
      %v159 = vadd.f32 %v103, %v104
      %v160 = vadd.f32 %v159, %v105
      %v161 = vadd.f32 %v160, %v106
      %162 = vadd.xlane.f32.xlu0 %v161
      %v163 = vpop.xlane.xlu0 %162
      %v164 = vadd.f32 %v111, %v112
      %v165 = vadd.f32 %v164, %v113
      %v166 = vadd.f32 %v165, %v114
      %167 = vadd.xlane.f32.xlu0 %v166
      %v168 = vpop.xlane.xlu0 %167
      %v169 = vadd.f32 %v119, %v120
      %v170 = vadd.f32 %v169, %v121
      %v171 = vadd.f32 %v170, %v122
      %172 = vadd.xlane.f32.xlu0 %v171
      %v173 = vpop.xlane.xlu0 %172
      %v174 = vadd.f32 %v127, %v128
      %v175 = vadd.f32 %v174, %v129
      %v176 = vadd.f32 %v175, %v130
      %177 = vadd.xlane.f32.xlu0 %v176
      %v178 = vpop.xlane.xlu0 %177
      %vm179 = vcmask 7168
      %v180 = vsel %vm179, %v158, %v163
      %vm181 = vcmask 15360
      %v182 = vsel %vm181, %v180, %v168
      %vm183 = vcmask 23552
      %v184 = vsel %vm183, %v182, %v173
      %vm185 = vcmask 31744
      %v186 = vsel %vm185, %v184, %v178
      %vm187 = vcmask 39936
      %188 = vst.msk [vmem:[%s2] sm:$0xff] %vm187, %v186
    $region25: #{tpu_custom_call.1} parent=1 // pred_fallthru
      _
    // Predicated region
    $region26: #{tpu_custom_call.1} parent=1 // pred_check
      _
    $region27: #{tpu_custom_call.1} parent=1 // pred_check_branch
      %190 = sbr.rel (0) target = $region29
    $region28: #{tpu_custom_call.1} parent=1 // pred_region
      _
    $region29: #{tpu_custom_call.1} parent=1 // pred_fallthru
      _
    // Predicated region
    $region30: #{tpu_custom_call.1} parent=1 // pred_check
      _
    $region31: #{tpu_custom_call.1} parent=1 // pred_check_branch
      %192 = sbr.rel (0) target = $region33
    $region32: #{tpu_custom_call.1} parent=1 // pred_region
      _
    $region33: #{tpu_custom_call.1} parent=1 // pred_fallthru
      _
    %193 = vsyncpa [#allocation8], 1
    %194 = vsyncpa [#allocation10], 1

</llo_original>
